<compile_context>
chip_gen: v7x
topology: tpu7x:2x2x1
jax: 0.10.0
libtpu: 0.0.40
codegen_flags: <defaults>
</compile_context>

<pallas_src>
import jax
import jax.numpy as jnp
from jax.experimental import pallas as pl
from jax.experimental.pallas import tpu as pltpu

_LANE = 128
_SUBLANE = 8


def _round_up(x, m):
    return (x + m - 1) // m * m


def _per_input_block_bytes():
    """Per-input VMEM block byte budget (generation-aware).

    3 inputs x 2 pipeline buffers x budget must fit comfortably in VMEM:
      v6e/v7x: 4 MiB/block -> 24 MiB double-buffered (<=32 MiB scoped / 64 MiB phys)
      v5e & others: 2 MiB/block -> 12 MiB double-buffered (<=16 MiB scoped)
    """
    try:
        kind = jax.devices()[0].device_kind.lower()
    except Exception:
        kind = ""
    if any(tag in kind for tag in ("v6", "v7", "trillium")):
        return 4 << 20
    return 2 << 20


def _make_kernel(rows, rows_blk, chunks_per_group, ragged):
    """rows/rows_blk/chunks_per_group/ragged are static Python values."""

    def kernel(o_ref, m_ref, g_ref, num_ref, den_ref):
        grp = pl.program_id(1)
        j = pl.program_id(2)              # reduction (chunk) axis, last in grid

        @pl.when(j == 0)
        def _init():
            num_ref[...] = jnp.zeros_like(num_ref)
            den_ref[...] = jnp.zeros_like(den_ref)

        def accumulate(apply_row_mask):
            o = o_ref[...]
            g = g_ref[...]
            m = m_ref[...]
            # mask is binary/non-negative: |o*m - g*m| == |o - g| * m
            err = jnp.abs(o - g)
            err = err * m.astype(err.dtype)       # stays bf16 if inputs are bf16
            err32 = err.astype(jnp.float32)
            m32 = m.astype(jnp.float32)

            if apply_row_mask:
                # Only the boundary chunk (or fully-padded chunks) pays this.
                chunk = grp * chunks_per_group + j
                row = (chunk * rows_blk
                       + jax.lax.broadcasted_iota(jnp.int32, (1, rows_blk, 1), 1))
                valid = row < rows
                # Mask BOTH: the out-of-range region holds unspecified data
                # (possibly NaN/Inf); jnp.where discards it.
                err32 = jnp.where(valid, err32, 0.0)
                m32 = jnp.where(valid, m32, 0.0)

            # Fold rows into an (8,128) vreg partial: pure elementwise VPU adds,
            # no XLU reduce and no scalar store in the steady-state loop.
            num_ref[...] += err32.reshape(-1, _SUBLANE, _LANE).sum(axis=0).reshape(
                1, 1, _SUBLANE, _LANE)
            den_ref[...] += m32.reshape(-1, _SUBLANE, _LANE).sum(axis=0).reshape(
                1, 1, _SUBLANE, _LANE)

        if ragged:
            chunk = grp * chunks_per_group + j
            is_full = (chunk + 1) * rows_blk <= rows

            @pl.when(is_full)
            def _full():
                accumulate(False)

            @pl.when(jnp.logical_not(is_full))
            def _partial():
                accumulate(True)
        else:
            accumulate(False)

    return kernel


def mae_loss(output, mask, ground_truth, normalizer=None, *, max_rows_blk=None):
    """Masked L1 loss. Returns (loss, output, ground_truth) like the PyTorch
    module. `normalizer` is accepted for API parity but unused (as in the
    reference)."""
    b, c, h, w = output.shape
    n = c * h * w

    def _flat(x):
        # reshape only (no dtype cast) -> no HBM copy in the common case.
        x = x.reshape(b, n)
        if n % _LANE:
            # TODO(synk): replace this rare HBM padding copy with an in-kernel
            # flat-element mask on the boundary chunk.
            x = jnp.pad(x, ((0, 0), (0, (-n) % _LANE)))
        return x.reshape(b, -1, _LANE)

    o3, m3, g3 = _flat(output), _flat(mask), _flat(ground_truth)
    rows = o3.shape[1]

    itemsize = max(o3.dtype.itemsize, m3.dtype.itemsize, g3.dtype.itemsize)
    if max_rows_blk is None:
        max_rows_blk = max(
            _SUBLANE,
            (_per_input_block_bytes() // (_LANE * itemsize)) // _SUBLANE * _SUBLANE)
    # rows_blk is always a multiple of 8 so the (-1, 8, 128) fold is legal.
    rows_blk = min(_round_up(rows, _SUBLANE), _round_up(max_rows_blk, _SUBLANE))
    n_chunks = pl.cdiv(rows, rows_blk)

    # Split the reduction range across 2 "parallel" row groups when the batch
    # alone cannot feed both v7x TensorCores; a no-op on 1-TC chips.
    n_groups = 2 if (b == 1 and n_chunks >= 2) else 1
    chunks_per_group = pl.cdiv(n_chunks, n_groups)
    padded_chunks = n_groups * chunks_per_group
    ragged = (padded_chunks * rows_blk) != rows

    if padded_chunks == n_chunks:
        def chunk_idx(g, j):
            return g * chunks_per_group + j
    else:
        def chunk_idx(g, j):
            # Clamp fully out-of-range padding chunks to a valid block index;
            # their contribution is zeroed by the in-kernel row mask.
            return jnp.minimum(g * chunks_per_group + j, n_chunks - 1)

    in_spec = pl.BlockSpec((1, rows_blk, _LANE),
                           lambda i, g, j: (i, chunk_idx(g, j), 0))
    out_spec = pl.BlockSpec((1, 1, _SUBLANE, _LANE),
                            lambda i, g, j: (i, g, 0, 0))
    part_shape = jax.ShapeDtypeStruct((b, n_groups, _SUBLANE, _LANE), jnp.float32)

    # Raise the scoped VMEM limit explicitly so the larger tiles compile on
    # every generation (16 MiB default on v5e, 32 MiB on v6e/v7x).
    vmem_limit = 3 * 2 * rows_blk * _LANE * itemsize + (4 << 20)

    kernel = _make_kernel(rows, rows_blk, chunks_per_group, ragged)

    num_p, den_p = pl.pallas_call(
        kernel,
        out_shape=(part_shape, part_shape),
        grid=(b, n_groups, chunks_per_group),
        in_specs=[in_spec, in_spec, in_spec],
        out_specs=(out_spec, out_spec),
        compiler_params=pltpu.CompilerParams(
            dimension_semantics=("parallel", "parallel", "arbitrary"),
            vmem_limit_bytes=int(vmem_limit)),
        cost_estimate=pl.CostEstimate(
            flops=int(5 * b * n),
            transcendentals=0,
            bytes_accessed=int(3 * b * n * itemsize
                               + 2 * b * n_groups * _SUBLANE * _LANE * 4)),
    )(o3, m3, g3)

    num = num_p.sum(axis=(1, 2, 3))
    den = den_p.sum(axis=(1, 2, 3))
    # Same division-by-zero hazard as the PyTorch reference (all-zero mask).
    loss = jnp.mean(num / den)
    return loss, output, ground_truth


def _ref_loss(output, mask, ground_truth):
    num = jnp.sum(jnp.abs(output * mask - ground_truth * mask), axis=(1, 2, 3))
    den = jnp.sum(mask, axis=(1, 2, 3))
    return jnp.mean(num / den)


if __name__ == "__main__":
    key = jax.random.PRNGKey(0)

    # --- test 1: small NCHW, single-chunk path --------------------------------
    k1, k2, k3, key = jax.random.split(key, 4)
    b, c, h, w = 2, 4, 16, 16
    output = jax.random.normal(k1, (b, c, h, w), dtype=jnp.float32)
    ground_truth = jax.random.normal(k2, (b, c, h, w), dtype=jnp.float32)
    # Channel-level mask (same #active channels per sample, as the PyTorch
    # gather requires) with a random binary pixel mask inside active channels.
    chan_active = jnp.array([[1, 0, 1, 1],
                             [1, 0, 1, 1]], dtype=jnp.float32)
    pix = jax.random.bernoulli(k3, 0.5, (b, c, h, w)).astype(jnp.float32)
    mask = pix * chan_active[:, :, None, None]
    normalizer = jnp.float32(1.0)

    loss, _, _ = mae_loss(output, mask, ground_truth, normalizer)
    loss = jax.block_until_ready(loss)
    ref = _ref_loss(output, mask, ground_truth)
    assert jnp.allclose(loss, ref, rtol=1e-5, atol=1e-6), (loss, ref)

    # --- test 2: chunked + ragged last chunk (pl.when masked path) ------------
    k1, k2, k3, key = jax.random.split(key, 4)
    b2, c2, h2, w2 = 2, 4, 40, 16            # rows = 20, forced rows_blk = 8
    out2 = jax.random.normal(k1, (b2, c2, h2, w2), dtype=jnp.float32)
    gt2 = jax.random.normal(k2, (b2, c2, h2, w2), dtype=jnp.float32)
    mask2 = jax.random.bernoulli(k3, 0.5, (b2, c2, h2, w2)).astype(jnp.float32)

    loss2, _, _ = mae_loss(out2, mask2, gt2, normalizer, max_rows_blk=8)
    loss2 = jax.block_until_ready(loss2)
    ref2 = _ref_loss(out2, mask2, gt2)
    assert jnp.allclose(loss2, ref2, rtol=1e-5, atol=1e-6), (loss2, ref2)

    # --- test 3: b=1 -> 2 row groups (v7x megacore path) + padded chunks ------
    k1, k2, k3, key = jax.random.split(key, 4)
    b3, c3, h3, w3 = 1, 4, 40, 16            # rows = 20, rows_blk = 8, 3 chunks
    out3 = jax.random.normal(k1, (b3, c3, h3, w3), dtype=jnp.float32)
    gt3 = jax.random.normal(k2, (b3, c3, h3, w3), dtype=jnp.float32)
    mask3 = jax.random.bernoulli(k3, 0.5, (b3, c3, h3, w3)).astype(jnp.float32)

    loss3, _, _ = mae_loss(out3, mask3, gt3, normalizer, max_rows_blk=8)
    loss3 = jax.block_until_ready(loss3)
    ref3 = _ref_loss(out3, mask3, gt3)
    assert jnp.allclose(loss3, ref3, rtol=1e-5, atol=1e-6), (loss3, ref3)

    print("KERNEL_OK")
</pallas_src>

<mosaic_0001>
module attributes {stable_mosaic.version = 11 : i64} {
  func.func @kernel(%arg0: i32, %arg1: i32, %arg2: i32, %arg3: memref<1x8x128xf32, #tpu.memory_space<vmem>>, %arg4: memref<1x8x128xf32, #tpu.memory_space<vmem>>, %arg5: memref<1x8x128xf32, #tpu.memory_space<vmem>>, %arg6: memref<1x1x8x128xf32, #tpu.memory_space<vmem>>, %arg7: memref<1x1x8x128xf32, #tpu.memory_space<vmem>>) attributes {dimension_semantics = [#tpu.dimension_semantics<parallel>, #tpu.dimension_semantics<parallel>, #tpu.dimension_semantics<arbitrary>], iteration_bounds = array<i64: 2, 1, 1>, scalar_prefetch = 0 : i64, scratch_operands = 0 : i64, tpu.core_type = #tpu.core_type<tc>, window_params = [{transform_indices = @transform_0, window_bounds = array<i64: 1, 8, 128>}, {transform_indices = @transform_1, window_bounds = array<i64: 1, 8, 128>}, {transform_indices = @transform_2, window_bounds = array<i64: 1, 8, 128>}, {transform_indices = @transform_3, window_bounds = array<i64: 1, 1, 8, 128>}, {transform_indices = @transform_4, window_bounds = array<i64: 1, 1, 8, 128>}]} {
    %c0_i32 = arith.constant 0 : i32
    %0 = arith.cmpi eq, %arg2, %c0_i32 : i32
    %1 = arith.extui %0 : i1 to i32
    %c0_i32_0 = arith.constant 0 : i32
    %2 = arith.cmpi ne, %1, %c0_i32_0 : i32
    scf.if %2 {
      %cst_26 = arith.constant 0.000000e+00 : f32
      %19 = vector.broadcast %cst_26 : f32 to vector<1x1x8x128xf32>
      %c0_27 = arith.constant 0 : index
      %c0_28 = arith.constant 0 : index
      %c0_29 = arith.constant 0 : index
      %c0_30 = arith.constant 0 : index
      %20 = vector.load %arg6[%c0_27, %c0_28, %c0_29, %c0_30] : memref<1x1x8x128xf32, #tpu.memory_space<vmem>>, vector<1x1x8x128xf32>
      tpu.vector_store %arg6[%c0_27, %c0_28, %c0_29, %c0_30], %19 {strides = array<i32>} : memref<1x1x8x128xf32, #tpu.memory_space<vmem>>, vector<1x1x8x128xf32>,
      %cst_31 = arith.constant 0.000000e+00 : f32
      %21 = vector.broadcast %cst_31 : f32 to vector<1x1x8x128xf32>
      %c0_32 = arith.constant 0 : index
      %c0_33 = arith.constant 0 : index
      %c0_34 = arith.constant 0 : index
      %c0_35 = arith.constant 0 : index
      %22 = vector.load %arg7[%c0_32, %c0_33, %c0_34, %c0_35] : memref<1x1x8x128xf32, #tpu.memory_space<vmem>>, vector<1x1x8x128xf32>
      tpu.vector_store %arg7[%c0_32, %c0_33, %c0_34, %c0_35], %21 {strides = array<i32>} : memref<1x1x8x128xf32, #tpu.memory_space<vmem>>, vector<1x1x8x128xf32>,
    } else {
    }
    %c0 = arith.constant 0 : index
    %c0_1 = arith.constant 0 : index
    %c0_2 = arith.constant 0 : index
    %3 = vector.load %arg3[%c0, %c0_1, %c0_2] : memref<1x8x128xf32, #tpu.memory_space<vmem>>, vector<1x8x128xf32>
    %c0_3 = arith.constant 0 : index
    %c0_4 = arith.constant 0 : index
    %c0_5 = arith.constant 0 : index
    %4 = vector.load %arg5[%c0_3, %c0_4, %c0_5] : memref<1x8x128xf32, #tpu.memory_space<vmem>>, vector<1x8x128xf32>
    %c0_6 = arith.constant 0 : index
    %c0_7 = arith.constant 0 : index
    %c0_8 = arith.constant 0 : index
    %5 = vector.load %arg4[%c0_6, %c0_7, %c0_8] : memref<1x8x128xf32, #tpu.memory_space<vmem>>, vector<1x8x128xf32>
    %6 = arith.subf %3, %4 : vector<1x8x128xf32>
    %7 = math.absf %6 : vector<1x8x128xf32>
    %8 = arith.mulf %7, %5 : vector<1x8x128xf32>
    %c0_9 = arith.constant 0 : index
    %c0_10 = arith.constant 0 : index
    %c0_11 = arith.constant 0 : index
    %c0_12 = arith.constant 0 : index
    %9 = vector.load %arg6[%c0_9, %c0_10, %c0_11, %c0_12] : memref<1x1x8x128xf32, #tpu.memory_space<vmem>>, vector<1x1x8x128xf32>
    %cst = arith.constant dense<0.000000e+00> : vector<8x128xf32>
    %10 = vector.multi_reduction <add>, %8, %cst [0] : vector<1x8x128xf32> to vector<8x128xf32>
    %11 = vector.shape_cast %10 : vector<8x128xf32> to vector<1x1x8x128xf32>
    %12 = arith.addf %9, %11 : vector<1x1x8x128xf32>
    %c0_13 = arith.constant 0 : index
    %c0_14 = arith.constant 0 : index
    %c0_15 = arith.constant 0 : index
    %c0_16 = arith.constant 0 : index
    %13 = vector.load %arg6[%c0_13, %c0_14, %c0_15, %c0_16] : memref<1x1x8x128xf32, #tpu.memory_space<vmem>>, vector<1x1x8x128xf32>
    tpu.vector_store %arg6[%c0_13, %c0_14, %c0_15, %c0_16], %12 {strides = array<i32>} : memref<1x1x8x128xf32, #tpu.memory_space<vmem>>, vector<1x1x8x128xf32>,
    %c0_17 = arith.constant 0 : index
    %c0_18 = arith.constant 0 : index
    %c0_19 = arith.constant 0 : index
    %c0_20 = arith.constant 0 : index
    %14 = vector.load %arg7[%c0_17, %c0_18, %c0_19, %c0_20] : memref<1x1x8x128xf32, #tpu.memory_space<vmem>>, vector<1x1x8x128xf32>
    %cst_21 = arith.constant dense<0.000000e+00> : vector<8x128xf32>
    %15 = vector.multi_reduction <add>, %5, %cst_21 [0] : vector<1x8x128xf32> to vector<8x128xf32>
    %16 = vector.shape_cast %15 : vector<8x128xf32> to vector<1x1x8x128xf32>
    %17 = arith.addf %14, %16 : vector<1x1x8x128xf32>
    %c0_22 = arith.constant 0 : index
    %c0_23 = arith.constant 0 : index
    %c0_24 = arith.constant 0 : index
    %c0_25 = arith.constant 0 : index
    %18 = vector.load %arg7[%c0_22, %c0_23, %c0_24, %c0_25] : memref<1x1x8x128xf32, #tpu.memory_space<vmem>>, vector<1x1x8x128xf32>
    tpu.vector_store %arg7[%c0_22, %c0_23, %c0_24, %c0_25], %17 {strides = array<i32>} : memref<1x1x8x128xf32, #tpu.memory_space<vmem>>, vector<1x1x8x128xf32>,
    return
  }
  func.func @transform_0(%arg0: i32, %arg1: i32, %arg2: i32) -> (i32, i32, i32) {
    %c1_i32 = arith.constant 1 : i32
    %0 = arith.muli %arg1, %c1_i32 : i32
    %1 = arith.addi %0, %arg2 : i32
    %c0_i32 = arith.constant 0 : i32
    %c0_i32_0 = arith.constant 0 : i32
    return %arg0, %1, %c0_i32 : i32, i32, i32
  }
  func.func @transform_1(%arg0: i32, %arg1: i32, %arg2: i32) -> (i32, i32, i32) {
    %c1_i32 = arith.constant 1 : i32
    %0 = arith.muli %arg1, %c1_i32 : i32
    %1 = arith.addi %0, %arg2 : i32
    %c0_i32 = arith.constant 0 : i32
    %c0_i32_0 = arith.constant 0 : i32
    return %arg0, %1, %c0_i32 : i32, i32, i32
  }
  func.func @transform_2(%arg0: i32, %arg1: i32, %arg2: i32) -> (i32, i32, i32) {
    %c1_i32 = arith.constant 1 : i32
    %0 = arith.muli %arg1, %c1_i32 : i32
    %1 = arith.addi %0, %arg2 : i32
    %c0_i32 = arith.constant 0 : i32
    %c0_i32_0 = arith.constant 0 : i32
    return %arg0, %1, %c0_i32 : i32, i32, i32
  }
  func.func @transform_3(%arg0: i32, %arg1: i32, %arg2: i32) -> (i32, i32, i32, i32) {
    %c0_i32 = arith.constant 0 : i32
    %c0_i32_0 = arith.constant 0 : i32
    %c0_i32_1 = arith.constant 0 : i32
    return %arg0, %arg1, %c0_i32, %c0_i32_0 : i32, i32, i32, i32
  }
  func.func @transform_4(%arg0: i32, %arg1: i32, %arg2: i32) -> (i32, i32, i32, i32) {
    %c0_i32 = arith.constant 0 : i32
    %c0_i32_0 = arith.constant 0 : i32
    %c0_i32_1 = arith.constant 0 : i32
    return %arg0, %arg1, %c0_i32, %c0_i32_0 : i32, i32, i32, i32
  }
}

</mosaic_0001>

<llo_original>
// kernel: tpu_custom_call.1
$region0: #{tpu_custom_call.1}
  #allocation0 [shape = 'u32[]', space=smem, size = 0x4, offset = 0x4, fixed_abs, tag = 'smem constant byte address 0x4 - core index']
  #allocation1 [shape = 'u32[144,128]{1,0:T(1,128)}', space=vmem, size = 0x12000, scoped, tag = 'internal scratch']
  %s0 = inlined_call_operand.hbm [shape: f32[2,8,128], index: 0, kind: input, shape index: {}]
  %s1 = inlined_call_operand.hbm [shape: f32[2,8,128], index: 1, kind: input, shape index: {}]
  %s2 = inlined_call_operand.hbm [shape: f32[2,8,128], index: 2, kind: input, shape index: {}]
  %s3 = inlined_call_operand.hbm [shape: f32[2,1,8,128], index: 3, kind: output, shape index: {0}]
  %s4 = inlined_call_operand.hbm [shape: f32[2,1,8,128], index: 4, kind: output, shape index: {1}]
  %5 = xla_tuple %s3, %s4
  %s6 = sld [smem:[#allocation0]]
  $region69: #{tpu_custom_call.1} parent=0
    _
  %s8 = ssub.s32 1, %s6
  %s9 = scalar_select 0, %s8, %s6
  $region1: #{tpu_custom_call.1} parent=0
    #allocation2 [shape = 'u8[8192]{0}', space=vmem, size = 0x2000, scoped, tag = 'input window, operand 0']
    #allocation3 [shape = 's32[2]{0}', space=sflag, size = 0x8, scoped, tag = 'scoped memory for tpu_custom_call.1']
    #allocation4 [shape = 's32[2]{0}', space=sflag, size = 0x8, scoped, tag = 'scoped memory for tpu_custom_call.1']
    #allocation5 [shape = 'u8[8192]{0}', space=vmem, size = 0x2000, scoped, tag = 'input window, operand 1']
    #allocation6 [shape = 's32[2]{0}', space=sflag, size = 0x8, scoped, tag = 'scoped memory for tpu_custom_call.1']
    #allocation7 [shape = 'u8[8192]{0}', space=vmem, size = 0x2000, scoped, tag = 'input window, operand 2']
    #allocation8 [shape = 'u8[8192]{0}', space=vmem, size = 0x2000, scoped, tag = 'output window, operand 0']
    #allocation9 [shape = 'u8[8192]{0}', space=vmem, size = 0x2000, scoped, tag = 'output window, operand 1']
    #allocation10 [shape = 's32[2]{0}', space=sflag, size = 0x8, scoped, tag = 'scoped memory for tpu_custom_call.1']
    %10 = vsyncpa [#allocation3], 0
    %s11 = scalar_lea.sflag [#allocation3], 1
    %12 = vsyncpa %s11, 0
    %13 = vsyncpa [#allocation6], 0
    %s14 = scalar_lea.sflag [#allocation6], 1
    %15 = vsyncpa %s14, 0
    %16 = vsyncpa [#allocation4], 0
    %s17 = scalar_lea.sflag [#allocation4], 1
    %18 = vsyncpa %s17, 0
    %19 = vsyncpa [#allocation10], 0
    %s20 = scalar_lea.sflag [#allocation10], 1
    %21 = vsyncpa %s20, 0
    loop: start=0, step=1, limit=4
    $region2: #{tpu_custom_call.1} parent=1 // loop_pre_header
      _
    $region3: #{tpu_custom_call.1} parent=1 // loop_header
      %s23 = sphi 0, %s27
      %p24 = scmp.ge.s32.totalorder %s23, 4
      %s30 = sphi 0, %s49
      %s31 = sphi 0, %s45
      %s32 = sphi 0, %s41
      %s33 = sphi 0, %s30
      %s34 = sphi 0, %s31
      %s35 = sphi 0, %s32
      %s36 = sphi 0, %s33
      %s37 = sphi 0, %s34
      %s38 = sphi 0, %s35
      %s56 = sphi 0, %s58
      %s59 = sphi 0, %s56
      %s60 = sphi 0, %s59
      %s76 = sphi 0, %s60
      %s86 = sphi 0, %s88
      %s89 = sphi 0, %s86
      %s90 = sphi 0, %s89
      %s106 = sphi 0, %s90
      %s116 = sphi 0, %s118
      %s119 = sphi 0, %s116
      %s120 = sphi 0, %s119
      %s136 = sphi 0, %s120
      %s144 = sphi 0, %s146
      %s147 = sphi 0, %s144
      %s148 = sphi 0, %s147
      %s164 = sphi 0, %s148
      %s172 = sphi 0, %s174
      %s175 = sphi 0, %s172
      %s176 = sphi 0, %s175
      %s192 = sphi 0, %s176
    $region4: #{tpu_custom_call.1} parent=1 // loop_header_branch
      %26 = sbr.rel (%p24) target = $region8
    $region5: #{tpu_custom_call.1} parent=1 // loop_body
      %s28 = ssub.s32 %s23, 1
      %s29 = ssub.s32 %s23, 2
      %s39 = sadd.s32 1, %s32
      %p40 = scmp.ge.s32.totalorder %s39, 1
      %s41 = scalar_select %p40, 0, %s39
      %s42 = sadd.s32 1, %s31
      %s43 = scalar_select %p40, %s42, %s31
      %p44 = scmp.ge.s32.totalorder %s43, 1
      %s45 = scalar_select %p44, 0, %s43
      %s46 = sadd.s32 1, %s30
      %s47 = scalar_select %p44, %s46, %s30
      %p48 = scmp.ge.s32.totalorder %s47, 2
      %s49 = scalar_select %p48, 0, %s47
      %s50 = sadd.s32 %s31, %s32
      %s51 = sadd.s32 %s45, %s41
      %s52 = ssub.s32 %s30, %s49
      %s53 = ssub.s32 %s50, %s51
      %s54 = sor.u32 %s52, %s53
      %p55 = scmp.eq.s32.totalorder %s54, 0
      %s57 = sadd.s32 %s56, 1
      %s58 = scalar_select %p55, %s56, %s57
      %p61 = pneg %p55
      %p62 = scmp.eq.s32.totalorder %s23, 1
      %p63 = por %p61, %p62
      %p64 = scmp.ne.s32.totalorder %s56, %s59
      %p65 = scmp.eq.s32.totalorder %s23, 0
      %p66 = por %p64, %p65
      %p67 = scmp.ne.s32.totalorder %s56, %s59
      %p68 = scmp.eq.s32.totalorder %s28, 1
      %p69 = por %p67, %p68
      %p70 = scmp.ne.s32.totalorder %s59, %s60
      %p71 = scmp.eq.s32.totalorder %s28, 0
      %p72 = por %p70, %p71
      %p73 = scmp.ne.s32.totalorder %s59, %s60
      %p74 = scmp.eq.s32.totalorder %s29, 1
      %p75 = por %p73, %p74
      %p77 = scmp.ne.s32.totalorder %s60, %s76
      %p78 = scmp.eq.s32.totalorder %s29, 0
      %p79 = por %p77, %p78
      %s80 = sadd.s32 %s31, %s32
      %s81 = sadd.s32 %s45, %s41
      %s82 = ssub.s32 %s30, %s49
      %s83 = ssub.s32 %s80, %s81
      %s84 = sor.u32 %s82, %s83
      %p85 = scmp.eq.s32.totalorder %s84, 0
      %s87 = sadd.s32 %s86, 1
      %s88 = scalar_select %p85, %s86, %s87
      %p91 = pneg %p85
      %p92 = scmp.eq.s32.totalorder %s23, 1
      %p93 = por %p91, %p92
      %p94 = scmp.ne.s32.totalorder %s86, %s89
      %p95 = scmp.eq.s32.totalorder %s23, 0
      %p96 = por %p94, %p95
      %p97 = scmp.ne.s32.totalorder %s86, %s89
      %p98 = scmp.eq.s32.totalorder %s28, 1
      %p99 = por %p97, %p98
      %p100 = scmp.ne.s32.totalorder %s89, %s90
      %p101 = scmp.eq.s32.totalorder %s28, 0
      %p102 = por %p100, %p101
      %p103 = scmp.ne.s32.totalorder %s89, %s90
      %p104 = scmp.eq.s32.totalorder %s29, 1
      %p105 = por %p103, %p104
      %p107 = scmp.ne.s32.totalorder %s90, %s106
      %p108 = scmp.eq.s32.totalorder %s29, 0
      %p109 = por %p107, %p108
      %s110 = sadd.s32 %s31, %s32
      %s111 = sadd.s32 %s45, %s41
      %s112 = ssub.s32 %s30, %s49
      %s113 = ssub.s32 %s110, %s111
      %s114 = sor.u32 %s112, %s113
      %p115 = scmp.eq.s32.totalorder %s114, 0
      %s117 = sadd.s32 %s116, 1
      %s118 = scalar_select %p115, %s116, %s117
      %p121 = pneg %p115
      %p122 = scmp.eq.s32.totalorder %s23, 1
      %p123 = por %p121, %p122
      %p124 = scmp.ne.s32.totalorder %s116, %s119
      %p125 = scmp.eq.s32.totalorder %s23, 0
      %p126 = por %p124, %p125
      %p127 = scmp.ne.s32.totalorder %s116, %s119
      %p128 = scmp.eq.s32.totalorder %s28, 1
      %p129 = por %p127, %p128
      %p130 = scmp.ne.s32.totalorder %s119, %s120
      %p131 = scmp.eq.s32.totalorder %s28, 0
      %p132 = por %p130, %p131
      %p133 = scmp.ne.s32.totalorder %s119, %s120
      %p134 = scmp.eq.s32.totalorder %s29, 1
      %p135 = por %p133, %p134
      %p137 = scmp.ne.s32.totalorder %s120, %s136
      %p138 = scmp.eq.s32.totalorder %s29, 0
      %p139 = por %p137, %p138
      %s140 = ssub.s32 %s30, %s49
      %s141 = ssub.s32 %s31, %s45
      %s142 = sor.u32 %s140, %s141
      %p143 = scmp.eq.s32.totalorder %s142, 0
      %s145 = sadd.s32 %s144, 1
      %s146 = scalar_select %p143, %s144, %s145
      %p149 = pneg %p143
      %p150 = scmp.eq.s32.totalorder %s23, 1
      %p151 = por %p149, %p150
      %p152 = scmp.ne.s32.totalorder %s144, %s147
      %p153 = scmp.eq.s32.totalorder %s23, 0
      %p154 = por %p152, %p153
      %p155 = scmp.ne.s32.totalorder %s144, %s147
      %p156 = scmp.eq.s32.totalorder %s28, 1
      %p157 = por %p155, %p156
      %p158 = scmp.ne.s32.totalorder %s147, %s148
      %p159 = scmp.eq.s32.totalorder %s28, 0
      %p160 = por %p158, %p159
      %p161 = scmp.ne.s32.totalorder %s147, %s148
      %p162 = scmp.eq.s32.totalorder %s29, 1
      %p163 = por %p161, %p162
      %p165 = scmp.ne.s32.totalorder %s148, %s164
      %p166 = scmp.eq.s32.totalorder %s29, 0
      %p167 = por %p165, %p166
      %s168 = ssub.s32 %s30, %s49
      %s169 = ssub.s32 %s31, %s45
      %s170 = sor.u32 %s168, %s169
      %p171 = scmp.eq.s32.totalorder %s170, 0
      %s173 = sadd.s32 %s172, 1
      %s174 = scalar_select %p171, %s172, %s173
      %p177 = pneg %p171
      %p178 = scmp.eq.s32.totalorder %s23, 1
      %p179 = por %p177, %p178
      %p180 = scmp.ne.s32.totalorder %s172, %s175
      %p181 = scmp.eq.s32.totalorder %s23, 0
      %p182 = por %p180, %p181
      %p183 = scmp.ne.s32.totalorder %s172, %s175
      %p184 = scmp.eq.s32.totalorder %s28, 1
      %p185 = por %p183, %p184
      %p186 = scmp.ne.s32.totalorder %s175, %s176
      %p187 = scmp.eq.s32.totalorder %s28, 0
      %p188 = por %p186, %p187
      %p189 = scmp.ne.s32.totalorder %s175, %s176
      %p190 = scmp.eq.s32.totalorder %s29, 1
      %p191 = por %p189, %p190
      %p193 = scmp.ne.s32.totalorder %s176, %s192
      %p194 = scmp.eq.s32.totalorder %s29, 0
      %p195 = por %p193, %p194
      %p196 = scmp.le.s32.totalorder 1, %s23
      %p197 = scmp.lt.s32.totalorder %s23, 3
      %p198 = pnand %p196, %p197
      %p199 = pneg %p198
      // Predicated region
      $region9: #{tpu_custom_call.1} parent=5 // pred_check
        _
      $region10: #{tpu_custom_call.1} parent=5 // pred_check_branch
        %201 = sbr.rel (%p198) target = $region12
      $region11: #{tpu_custom_call.1} parent=5 // pred_region
        %s202 = ssub.s32 %s23, 1
      $region12: #{tpu_custom_call.1} parent=5 // pred_fallthru
        _
      %p203 = scmp.lt.s32.totalorder %s23, 2
      // Predicated region
      $region13: #{tpu_custom_call.1} parent=5 // pred_check
        %p204 = pneg %p203
      $region14: #{tpu_custom_call.1} parent=5 // pred_check_branch
        %206 = sbr.rel (%p204) target = $region16
      $region15: #{tpu_custom_call.1} parent=5 // pred_region
        // Predicated region
        $region17: #{tpu_custom_call.1} parent=15 // pred_check
          %p207 = pneg %p66
        $region18: #{tpu_custom_call.1} parent=15 // pred_check_branch
          %209 = sbr.rel (%p207) target = $region20
        $region19: #{tpu_custom_call.1} parent=15 // pred_region
          %s210 = sand.u32 %s56, 1
          %s211 = scalar_lea.sflag [#allocation3], %s210
          %s212 = sand.u32 %s56, 1
          %s213 = smul.addr %s212, 8
          %s214 = scalar_lea.vmem [#allocation2], %s213
          %s215 = sadd.s32 %s31, %s32
          %s217 = ssub.s32 128, 128
          %218 = vsyncadd %s211, %s217
          %s219 = sadd.s32 %s215, %s30
          %s220 = smul.addr %s219, 128
          %s221 = scalar_lea.hbm %s0, %s220
          %s223 = sshll.u32 %s214, 4
          %s224 = int_to_ptr.vmem [resolvable:$true] %s223
          %226 = dma.hbm_to_vmem [thread:$0]  %s221, 128, %s224, %s211
        $region20: #{tpu_custom_call.1} parent=15 // pred_fallthru
          _
        // Predicated region
        $region21: #{tpu_custom_call.1} parent=15 // pred_check
          %p227 = pneg %p96
        $region22: #{tpu_custom_call.1} parent=15 // pred_check_branch
          %229 = sbr.rel (%p227) target = $region24
        $region23: #{tpu_custom_call.1} parent=15 // pred_region
          %s230 = sand.u32 %s23, 1
          %s231 = scalar_lea.sflag [#allocation6], %s230
          %s232 = sand.u32 %s86, 1
          %s233 = smul.addr %s232, 8
          %s234 = scalar_lea.vmem [#allocation5], %s233
          %s235 = sadd.s32 %s31, %s32
          %s237 = ssub.s32 128, 128
          %238 = vsyncadd %s231, %s237
          %s239 = sadd.s32 %s235, %s30
          %s240 = smul.addr %s239, 128
          %s241 = scalar_lea.hbm %s1, %s240
          %s243 = sshll.u32 %s234, 4
          %s244 = int_to_ptr.vmem [resolvable:$true] %s243
          %246 = dma.hbm_to_vmem [thread:$0]  %s241, 128, %s244, %s231
        $region24: #{tpu_custom_call.1} parent=15 // pred_fallthru
          _
        // Predicated region
        $region25: #{tpu_custom_call.1} parent=15 // pred_check
          %p247 = pneg %p126
        $region26: #{tpu_custom_call.1} parent=15 // pred_check_branch
          %249 = sbr.rel (%p247) target = $region28
        $region27: #{tpu_custom_call.1} parent=15 // pred_region
          %s250 = sand.u32 %s23, 1
          %s251 = scalar_lea.sflag [#allocation6], %s250
          %s252 = sand.u32 %s116, 1
          %s253 = smul.addr %s252, 8
          %s254 = scalar_lea.vmem [#allocation7], %s253
          %s255 = sadd.s32 %s31, %s32
          %s257 = ssub.s32 128, 128
          %258 = vsyncadd %s251, %s257
          %s259 = sadd.s32 %s255, %s30
          %s260 = smul.addr %s259, 128
          %s261 = scalar_lea.hbm %s2, %s260
          %s263 = sshll.u32 %s254, 4
          %s264 = int_to_ptr.vmem [resolvable:$true] %s263
          %266 = dma.hbm_to_vmem [thread:$0]  %s261, 128, %s264, %s251
        $region28: #{tpu_custom_call.1} parent=15 // pred_fallthru
          _
      $region16: #{tpu_custom_call.1} parent=5 // pred_fallthru
        _
      %p267 = scmp.le.s32.totalorder 1, %s23
      %p268 = scmp.lt.s32.totalorder %s23, 3
      %p269 = pnand %p267, %p268
      %p270 = pneg %p269
      // Predicated region
      $region29: #{tpu_custom_call.1} parent=5 // pred_check
        _
      $region30: #{tpu_custom_call.1} parent=5 // pred_check_branch
        %272 = sbr.rel (%p269) target = $region32
      $region31: #{tpu_custom_call.1} parent=5 // pred_region
        %s273 = ssub.s32 %s23, 1
        %s274 = sand.u32 %s59, 1
        %s275 = scalar_lea.sflag [#allocation3], %s274
        %s276 = sand.u32 %s59, 1
        %s277 = smul.addr %s276, 8
        %s278 = scalar_lea.vmem [#allocation2], %s277
        // Predicated region
        $region33: #{tpu_custom_call.1} parent=31 // pred_check
          %p279 = pneg %p72
        $region34: #{tpu_custom_call.1} parent=31 // pred_check_branch
          %281 = sbr.rel (%p279) target = $region36
        $region35: #{tpu_custom_call.1} parent=31 // pred_region
          %282 = dma.done %s275, 128
        $region36: #{tpu_custom_call.1} parent=31 // pred_fallthru
          _
        %s283 = sand.u32 %s28, 1
        %s284 = scalar_lea.sflag [#allocation6], %s283
        %s285 = sand.u32 %s89, 1
        %s286 = smul.addr %s285, 8
        %s287 = scalar_lea.vmem [#allocation5], %s286
        // Predicated region
        $region37: #{tpu_custom_call.1} parent=31 // pred_check
          %p288 = pneg %p102
        $region38: #{tpu_custom_call.1} parent=31 // pred_check_branch
          %290 = sbr.rel (%p288) target = $region40
        $region39: #{tpu_custom_call.1} parent=31 // pred_region
          %291 = dma.done %s284, 128
        $region40: #{tpu_custom_call.1} parent=31 // pred_fallthru
          _
        %s292 = sand.u32 %s28, 1
        %s293 = scalar_lea.sflag [#allocation6], %s292
        %s294 = sand.u32 %s119, 1
        %s295 = smul.addr %s294, 8
        %s296 = scalar_lea.vmem [#allocation7], %s295
        // Predicated region
        $region41: #{tpu_custom_call.1} parent=31 // pred_check
          %p297 = pneg %p132
        $region42: #{tpu_custom_call.1} parent=31 // pred_check_branch
          %299 = sbr.rel (%p297) target = $region44
        $region43: #{tpu_custom_call.1} parent=31 // pred_region
          %300 = dma.done %s293, 128
        $region44: #{tpu_custom_call.1} parent=31 // pred_fallthru
          _
        %s301 = sand.u32 %s59, 1
        %s302 = scalar_lea.sflag [#allocation3], %s301
        %s303 = sand.u32 %s59, 1
        %s304 = smul.addr %s303, 8
        %s305 = scalar_lea.vmem [#allocation2], %s304
        %p306 = pneg %p72
        %p307 = pneg %p69
        %s308 = sand.u32 %s28, 1
        %s309 = scalar_lea.sflag [#allocation6], %s308
        %s310 = sand.u32 %s89, 1
        %s311 = smul.addr %s310, 8
        %s312 = scalar_lea.vmem [#allocation5], %s311
        %p313 = pneg %p102
        %p314 = pneg %p99
        %s315 = sand.u32 %s28, 1
        %s316 = scalar_lea.sflag [#allocation6], %s315
        %s317 = sand.u32 %s119, 1
        %s318 = smul.addr %s317, 8
        %s319 = scalar_lea.vmem [#allocation7], %s318
        %p320 = pneg %p132
        %p321 = pneg %p129
        %p322 = pneg %p160
        %p323 = pneg %p157
        %s324 = sand.u32 %s147, 1
        %s325 = scalar_lea.sflag [#allocation4], %s324
        %s326 = sand.u32 %s147, 1
        %s327 = smul.addr %s326, 8
        %s328 = scalar_lea.vmem [#allocation8], %s327
        %p329 = pneg %p188
        %p330 = pneg %p185
        %s331 = sand.u32 %s175, 1
        %s332 = scalar_lea.sflag [#allocation10], %s331
        %s333 = sand.u32 %s175, 1
        %s334 = smul.addr %s333, 8
        %s335 = scalar_lea.vmem [#allocation9], %s334
        %s336 = sadd.s32 %s34, %s35
        %s337 = sadd.s32 %s34, %s35
        %s338 = sadd.s32 %s34, %s35
        %p339 = scmp.eq.s32.totalorder %s35, 0
        // Predicated region
        $region45: #{tpu_custom_call.1} parent=31 // pred_check
          %p340 = pneg %p339
        $region46: #{tpu_custom_call.1} parent=31 // pred_check_branch
          %342 = sbr.rel (%p340) target = $region48
        $region47: #{tpu_custom_call.1} parent=31 // pred_region
          %343 = vst [vmem:[%s328] sm:$0xff] 0.0
          %344 = vst [vmem:[%s335] sm:$0xff] 0.0
        $region48: #{tpu_custom_call.1} parent=31 // pred_fallthru
          _
        %v345 = vld [vmem:[%s278] sm:$0xff]
        %v346 = vld [vmem:[%s296] sm:$0xff]
        %v347 = vld [vmem:[%s287] sm:$0xff]
        %v348 = vsub.f32 %v345, %v346
        %v349 = vand.u32 2147483647, %v348
        %v350 = vmul.f32 %v349, %v347
        %v351 = vld [vmem:[%s328] sm:$0xff]
        %v352 = vadd.f32 %v350, 0.0
        %v353 = vadd.f32 %v351, %v352
        %354 = vst [vmem:[%s328] sm:$0xff] %v353
        %v355 = vld [vmem:[%s335] sm:$0xff]
        %v356 = vadd.f32 %v347, 0.0
        %v357 = vadd.f32 %v355, %v356
        %358 = vst [vmem:[%s335] sm:$0xff] %v357
        %s359 = sand.u32 %s147, 1
        %s360 = scalar_lea.sflag [#allocation4], %s359
        %s361 = sand.u32 %s147, 1
        %s362 = smul.addr %s361, 8
        %s363 = scalar_lea.vmem [#allocation8], %s362
        %s364 = sand.u32 %s175, 1
        %s365 = scalar_lea.sflag [#allocation10], %s364
        %s366 = sand.u32 %s175, 1
        %s367 = smul.addr %s366, 8
        %s368 = scalar_lea.vmem [#allocation9], %s367
        // Predicated region
        $region49: #{tpu_custom_call.1} parent=31 // pred_check
          %p369 = pneg %p157
        $region50: #{tpu_custom_call.1} parent=31 // pred_check_branch
          %371 = sbr.rel (%p369) target = $region52
        $region51: #{tpu_custom_call.1} parent=31 // pred_region
          %s373 = ssub.s32 128, 128
          %374 = vsyncadd %s360, %s373
          %s375 = sadd.s32 %s34, %s33
          %s376 = smul.addr %s375, 128
          %s377 = scalar_lea.hbm %s3, %s376
          %s379 = sshll.u32 %s363, 4
          %s380 = int_to_ptr.vmem [resolvable:$true] %s379
          %382 = dma.vmem_to_hbm [thread:$0]  %s380, 128, %s377, %s360
        $region52: #{tpu_custom_call.1} parent=31 // pred_fallthru
          _
        // Predicated region
        $region53: #{tpu_custom_call.1} parent=31 // pred_check
          %p383 = pneg %p185
        $region54: #{tpu_custom_call.1} parent=31 // pred_check_branch
          %385 = sbr.rel (%p383) target = $region56
        $region55: #{tpu_custom_call.1} parent=31 // pred_region
          %s387 = ssub.s32 128, 128
          %388 = vsyncadd %s365, %s387
          %s389 = sadd.s32 %s34, %s33
          %s390 = smul.addr %s389, 128
          %s391 = scalar_lea.hbm %s4, %s390
          %s393 = sshll.u32 %s368, 4
          %s394 = int_to_ptr.vmem [resolvable:$true] %s393
          %396 = dma.vmem_to_hbm [thread:$0]  %s394, 128, %s391, %s365
        $region56: #{tpu_custom_call.1} parent=31 // pred_fallthru
          _
      $region32: #{tpu_custom_call.1} parent=5 // pred_fallthru
        _
      %p397 = scmp.le.s32.totalorder 2, %s23
      // Predicated region
      $region57: #{tpu_custom_call.1} parent=5 // pred_check
        %p398 = pneg %p397
      $region58: #{tpu_custom_call.1} parent=5 // pred_check_branch
        %400 = sbr.rel (%p398) target = $region60
      $region59: #{tpu_custom_call.1} parent=5 // pred_region
        %s401 = ssub.s32 %s23, 2
        // Predicated region
        $region61: #{tpu_custom_call.1} parent=59 // pred_check
          %p402 = pneg %p163
        $region62: #{tpu_custom_call.1} parent=59 // pred_check_branch
          %404 = sbr.rel (%p402) target = $region64
        $region63: #{tpu_custom_call.1} parent=59 // pred_region
          %s405 = sand.u32 %s148, 1
          %s406 = scalar_lea.sflag [#allocation4], %s405
          %s407 = sand.u32 %s148, 1
          %s408 = smul.addr %s407, 8
          %s409 = scalar_lea.vmem [#allocation8], %s408
          %410 = dma.done %s406, 128
        $region64: #{tpu_custom_call.1} parent=59 // pred_fallthru
          _
        // Predicated region
        $region65: #{tpu_custom_call.1} parent=59 // pred_check
          %p411 = pneg %p191
        $region66: #{tpu_custom_call.1} parent=59 // pred_check_branch
          %413 = sbr.rel (%p411) target = $region68
        $region67: #{tpu_custom_call.1} parent=59 // pred_region
          %s414 = sand.u32 %s176, 1
          %s415 = scalar_lea.sflag [#allocation10], %s414
          %s416 = sand.u32 %s176, 1
          %s417 = smul.addr %s416, 8
          %s418 = scalar_lea.vmem [#allocation9], %s417
          %419 = dma.done %s415, 128
        $region68: #{tpu_custom_call.1} parent=59 // pred_fallthru
          _
      $region60: #{tpu_custom_call.1} parent=5 // pred_fallthru
        _
    $region6: #{tpu_custom_call.1} parent=1 // loop_footer
      %s27 = sadd.s32 1, %s23
    $region7: #{tpu_custom_call.1} parent=1 // loop_footer_branch
      %22 = sbr.rel target = $region3
    $region8: #{tpu_custom_call.1} parent=1 // loop_exit
      _
    %420 = vsyncpa [#allocation3], 1
    %s421 = scalar_lea.sflag [#allocation3], 1
    %422 = vsyncpa %s421, 1
    %423 = vsyncpa [#allocation6], 1
    %s424 = scalar_lea.sflag [#allocation6], 1
    %425 = vsyncpa %s424, 1
    %426 = vsyncpa [#allocation4], 1
    %s427 = scalar_lea.sflag [#allocation4], 1
    %428 = vsyncpa %s427, 1
    %429 = vsyncpa [#allocation10], 1
    %s430 = scalar_lea.sflag [#allocation10], 1
    %431 = vsyncpa %s430, 1

</llo_original>
